<compile_context>
chip_gen: v7x
topology: tpu7x:2x2x1
jax: 0.10.0
libtpu: 0.0.40
codegen_flags: <defaults>
</compile_context>

<pallas_src>
import functools

import jax
import jax.numpy as jnp
from jax.experimental import pallas as pl
from jax.experimental.pallas import tpu as pltpu

_LANE = 128          # lane width: last-dim alignment for lane-dense outputs
_SUBLANE = 8         # f32 sublane alignment
_MAX_TILE_M = 512    # cap on M-tile rows


def _round_up(n, m):
    return ((n + m - 1) // m) * m


def _cdiv(a, b):
    return (a + b - 1) // b


@functools.lru_cache(maxsize=1)
def _tpu_config():
    """(vmem_capacity_bytes, tensorcores_per_chip) with safe fallbacks."""
    vmem = 64 * 1024 * 1024          # conservative default (v7x-sized VMEM)
    try:
        vmem = int(pltpu.get_tpu_info().vmem_capacity_bytes)
    except Exception:
        pass
    n_tc = 1                          # v5e / v6e: 1 TensorCore per chip
    try:
        kind = jax.devices()[0].device_kind.lower()
        if "v7" in kind or "7x" in kind:
            n_tc = 2                  # v7x: 2 TensorCores share the chip
    except Exception:
        pass
    return vmem, n_tc


def _vmem_budgets():
    cap, _ = _tpu_config()
    vmem_limit = min(int(0.75 * cap), 96 * 1024 * 1024)    # scoped-VMEM request
    fused_budget = min(int(0.50 * cap), 56 * 1024 * 1024)  # resident-weight budget
    return vmem_limit, fused_budget


def _choose_tile_m(M, n_tc):
    """Largest M tile (<=512 rows, multiple of 8). On 1-TC parts prefer one big
    grid step (the grid is a serial loop there); on v7x force >=2 steps and an
    EVEN step count so the 'parallel' M axis shards evenly over both cores."""
    M8 = _round_up(max(M, 1), _SUBLANE)
    min_steps = 2 if (n_tc > 1 and M8 >= 2 * _SUBLANE) else 1
    steps = max(_cdiv(M8, _MAX_TILE_M), min_steps)
    if n_tc > 1 and steps > 1:
        steps = _round_up(steps, 2)
    tile_m = _round_up(_cdiv(M8, steps), _SUBLANE)
    return tile_m, steps


def _resident_spec(shape):
    """BlockSpec for a grid-invariant (weight/bias) block: constant index_map
    so it is DMA'd once and stays resident; request single buffering (no point
    double-buffering a block that never changes). Falls back gracefully if
    pipeline_mode / Buffered is unavailable."""
    idx_map = lambda i: (0,) * len(shape)
    try:
        return pl.BlockSpec(shape, idx_map,
                            pipeline_mode=pl.Buffered(buffer_count=1))
    except (TypeError, AttributeError):
        return pl.BlockSpec(shape, idx_map)


# ----------------------------------------------------------------------------
# Fused MLP kernel: all layers in one kernel, activations stay in VMEM/vregs.
# ----------------------------------------------------------------------------
def _fused_mlp_kernel(*refs, n_layers, compute_dtype):
    # refs = (x_ref, w0, b0, w1, b1, ..., o_ref)
    x_ref, o_ref = refs[0], refs[-1]
    wb = refs[1:-1]
    h = x_ref[...]                           # already in compute dtype (wrapper cast)
    for li in range(n_layers):
        w = wb[2 * li][...]                  # pre-cast in wrapper: no per-step cast
        b = wb[2 * li + 1][...]              # f32 bias
        # Cast the LHS too so BOTH MXU operands are bf16 (native fast path);
        # accumulation stays f32. For very deep stacks where the compounding
        # bf16 rounding of h matters, pass compute_dtype=None.
        lhs = h if compute_dtype is None else h.astype(compute_dtype)
        h = jnp.dot(lhs, w, preferred_element_type=jnp.float32) + b
        if li < n_layers - 1:                # no ReLU after the last layer
            h = jnp.maximum(h, 0.0)
    o_ref[...] = h.astype(o_ref.dtype)


def _fused_mlp_call(xp, wps, bps, *, tile_m, out_dtype, compute_dtype, vmem_limit):
    M_pad, din = xp.shape
    dout_pad = wps[-1].shape[1]
    n_layers = len(wps)

    in_specs = [pl.BlockSpec((tile_m, din), lambda i: (i, 0))]
    flat_wb = []
    for w, b in zip(wps, bps):
        in_specs.append(_resident_spec(w.shape))
        in_specs.append(_resident_spec(b.shape))
        flat_wb += [w, b]

    kernel = functools.partial(_fused_mlp_kernel, n_layers=n_layers,
                               compute_dtype=compute_dtype)
    return pl.pallas_call(
        kernel,
        out_shape=jax.ShapeDtypeStruct((M_pad, dout_pad), out_dtype),
        grid_spec=pltpu.PrefetchScalarGridSpec(
            num_scalar_prefetch=0,
            grid=(M_pad // tile_m,),
            in_specs=in_specs,
            out_specs=pl.BlockSpec((tile_m, dout_pad), lambda i: (i, 0)),
        ),
        compiler_params=pltpu.CompilerParams(
            dimension_semantics=("parallel",),
            vmem_limit_bytes=vmem_limit,
        ),
    )(xp, *flat_wb)


# ----------------------------------------------------------------------------
# Fallback: per-layer M/N/K-tiled Linear (+fused bias/ReLU), f32 VMEM accumulator.
# Used when the resident weights do not fit the fused-kernel VMEM budget.
# ----------------------------------------------------------------------------
def _linear_tiled_kernel(x_ref, w_ref, b_ref, o_ref, acc_ref, *, apply_relu):
    @pl.when(pl.program_id(2) == 0)
    def _():
        acc_ref[...] = jnp.zeros_like(acc_ref)

    acc_ref[...] += jnp.dot(x_ref[...], w_ref[...],
                            preferred_element_type=jnp.float32)

    @pl.when(pl.program_id(2) == pl.num_programs(2) - 1)
    def _():
        y = acc_ref[...] + b_ref[...]
        if apply_relu:
            y = jnp.maximum(y, 0.0)
        o_ref[...] = y.astype(o_ref.dtype)


def _pick_tile(dim):
    for t in (512, 256, 128):
        if dim % t == 0:
            return t
    return dim          # < 128: full-extent block (legal)


def _pallas_linear_tiled(x, w, b2, *, apply_relu, tile_m, out_dtype, vmem_limit):
    M, K = x.shape
    N = w.shape[1]
    tile_n = _pick_tile(N)
    tile_k = _pick_tile(K)
    kernel = functools.partial(_linear_tiled_kernel, apply_relu=apply_relu)
    return pl.pallas_call(
        kernel,
        out_shape=jax.ShapeDtypeStruct((M, N), out_dtype),
        grid_spec=pltpu.PrefetchScalarGridSpec(
            num_scalar_prefetch=0,
            grid=(M // tile_m, N // tile_n, K // tile_k),   # reduction axis last
            in_specs=[
                pl.BlockSpec((tile_m, tile_k), lambda i, j, k: (i, k)),
                pl.BlockSpec((tile_k, tile_n), lambda i, j, k: (k, j)),
                pl.BlockSpec((1, tile_n), lambda i, j, k: (0, j)),
            ],
            out_specs=pl.BlockSpec((tile_m, tile_n), lambda i, j, k: (i, j)),
            scratch_shapes=[pltpu.VMEM((tile_m, tile_n), jnp.float32)],
        ),
        compiler_params=pltpu.CompilerParams(
            dimension_semantics=("parallel", "parallel", "arbitrary"),
            vmem_limit_bytes=vmem_limit,
        ),
    )(x, w, b2)


# ----------------------------------------------------------------------------
# Parameter preparation (hoisted padding + dtype cast) and forward wrappers.
# ----------------------------------------------------------------------------
def _prepare_params(params, compute_dtype, force_tiled=False):
    """Pad (and pre-cast to the MXU compute dtype) all weights/biases ONCE and
    pick the execution path. Padded weight rows/cols and bias entries are zero,
    so padded activation columns stay exactly zero through matmul+bias+ReLU."""
    dims = (params[0][0].shape[0],) + tuple(w.shape[1] for (w, _) in params)
    pdims = tuple(_round_up(d, _LANE) for d in dims)     # lane-dense outputs
    w_dtype = compute_dtype if compute_dtype is not None else params[0][0].dtype
    w_item = jnp.dtype(w_dtype).itemsize

    # Fused-path resident footprint: single-buffered weights + f32 biases +
    # a generous activation-tile estimate (tile_m <= 512, double-buffered I/O).
    rows = (dims[0],) + pdims[1:-1]
    weight_bytes = sum(r * c for r, c in zip(rows, pdims[1:])) * w_item
    bias_bytes = sum(pdims[1:]) * 4
    act_bytes = _MAX_TILE_M * (2 * dims[0] * w_item + 2 * pdims[-1] * 4
                               + 2 * max(pdims) * 4)
    _, fused_budget = _vmem_budgets()
    use_fused = (not force_tiled) and (
        weight_bytes + bias_bytes + act_bytes <= fused_budget)

    wps, bps = [], []
    for li, (w, b) in enumerate(params):
        # Fused path: first layer's K (== x feature dim) stays unpadded so x
        # needs no feature-dim pad/copy; later layers' K matches the previous
        # padded output.  Tiled fallback pads everything to lane multiples.
        row_to = dims[li] if (use_fused and li == 0) else pdims[li]
        wp = jnp.pad(w, ((0, row_to - w.shape[0]), (0, pdims[li + 1] - w.shape[1])))
        wps.append(wp.astype(w_dtype))
        bps.append(jnp.pad(b, (0, pdims[li + 1] - b.shape[0]))
                   .astype(jnp.float32).reshape(1, -1))
    return dict(wps=tuple(wps), bps=tuple(bps), dims=dims, pdims=pdims,
                use_fused=use_fused, compute_dtype=compute_dtype)


def _forward_prepared(x, prep):
    wps, bps = prep["wps"], prep["bps"]
    dims, pdims = prep["dims"], prep["pdims"]
    compute_dtype = prep["compute_dtype"]
    out_dtype = x.dtype
    lead = x.shape[:-1]
    xf = x.reshape(-1, dims[0])
    M = xf.shape[0]

    vmem_limit, _ = _vmem_budgets()
    _, n_tc = _tpu_config()
    tile_m, steps = _choose_tile_m(M, n_tc)
    M_pad = tile_m * steps

    if prep["use_fused"]:
        xp = xf if M_pad == M else jnp.pad(xf, ((0, M_pad - M), (0, 0)))
        if compute_dtype is not None:
            xp = xp.astype(compute_dtype)          # halves the x DMA for bf16
        out_p = _fused_mlp_call(xp, wps, bps, tile_m=tile_m, out_dtype=out_dtype,
                                compute_dtype=compute_dtype,
                                vmem_limit=vmem_limit)
    else:
        # Per-layer K/N-tiled fallback; inter-layer activations stay in the
        # compute dtype (bf16) to halve inter-layer HBM traffic.
        xp = jnp.pad(xf, ((0, M_pad - M), (0, pdims[0] - dims[0])))
        if compute_dtype is not None:
            xp = xp.astype(compute_dtype)
        h = xp
        n_layers = len(wps)
        for li in range(n_layers):
            last = li == n_layers - 1
            layer_out_dtype = out_dtype if last else (
                compute_dtype if compute_dtype is not None else out_dtype)
            h = _pallas_linear_tiled(h, wps[li], bps[li],
                                     apply_relu=not last, tile_m=tile_m,
                                     out_dtype=layer_out_dtype,
                                     vmem_limit=vmem_limit)
        out_p = h

    return out_p[:M, :dims[-1]].reshape(*lead, dims[-1])


def make_mlp_forward(params, *, compute_dtype=jnp.bfloat16, force_tiled=False):
    """Hoisted path: pads + casts parameters ONCE, returns a jitted forward(x)."""
    prep = _prepare_params(params, compute_dtype, force_tiled=force_tiled)

    @jax.jit
    def forward(x):
        return _forward_prepared(x, prep)

    return forward


def mlp_forward(x, params, *, compute_dtype=jnp.bfloat16, force_tiled=False):
    """Convenience single-shot forward (prepares params inline)."""
    prep = _prepare_params(params, compute_dtype, force_tiled=force_tiled)
    return _forward_prepared(x, prep)


# ----------------------------------------------------------------------------
# Params + reference
# ----------------------------------------------------------------------------
def init_mlp_params(key, in_dim, hidden_multipliers, out_dim=None,
                    dtype=jnp.float32):
    """Init matching nn.Linear's uniform(-1/sqrt(fan_in), 1/sqrt(fan_in))."""
    dims = [in_dim] + [in_dim * m for m in hidden_multipliers] + [out_dim or in_dim]
    params = []
    for din, dout in zip(dims[:-1], dims[1:]):
        key, kw, kb = jax.random.split(key, 3)
        bound = 1.0 / jnp.sqrt(din)
        w = jax.random.uniform(kw, (din, dout), dtype, -bound, bound)  # x @ W layout
        b = jax.random.uniform(kb, (dout,), dtype, -bound, bound)
        params.append((w, b))
    return params


def mlp_reference(x, params):
    n_layers = len(params)
    for li, (w, b) in enumerate(params):
        x = x @ w + b
        if li < n_layers - 1:
            x = jnp.maximum(x, 0.0)
    return x


if __name__ == "__main__":
    key = jax.random.PRNGKey(0)
    in_dim = 32
    hidden_multipliers = (2, 2)      # dims: 32 -> 64 -> 64 -> 32
    out_dim = 32

    kp, kx1, kx2 = jax.random.split(key, 3)
    params = init_mlp_params(kp, in_dim, hidden_multipliers, out_dim)

    # --- primary path: prepared (hoisted padding/cast) + fused, bf16 MXU ops ---
    fwd = make_mlp_forward(params)                       # default bf16 compute
    x1 = jax.random.normal(kx1, (2, 8, in_dim), dtype=jnp.float32)
    ref1 = mlp_reference(x1, params)
    out1 = jax.block_until_ready(fwd(x1))
    assert out1.shape == (2, 8, out_dim)
    assert out1.dtype == x1.dtype
    assert jnp.allclose(out1, ref1, atol=5e-2, rtol=5e-2), "fused bf16 mismatch"

    # --- f32 MXU-operand path: exactness check of the fused kernel ---
    fwd_f32 = jax.jit(functools.partial(mlp_forward, compute_dtype=None))
    out1_f32 = jax.block_until_ready(fwd_f32(x1, params))
    assert jnp.allclose(out1_f32, ref1, atol=1e-4, rtol=1e-4), "fused f32 mismatch"

    # --- forced K/N-tiled fallback path (bf16 inter-layer activations) ---
    fwd_tiled = make_mlp_forward(params, force_tiled=True)
    out1_t = jax.block_until_ready(fwd_tiled(x1))
    assert jnp.allclose(out1_t, ref1, atol=5e-2, rtol=5e-2), "tiled mismatch"

    # --- ragged batch: M = 250 rows, padded to the chosen M tile ---
    x2 = jax.random.normal(kx2, (5, 50, in_dim), dtype=jnp.float32)
    ref2 = mlp_reference(x2, params)
    out2 = jax.block_until_ready(fwd(x2))
    assert out2.shape == (5, 50, out_dim)
    assert jnp.allclose(out2, ref2, atol=5e-2, rtol=5e-2), "ragged-batch mismatch"

    print("KERNEL_OK")
</pallas_src>

<mosaic_0001>
module attributes {stable_mosaic.version = 11 : i64} {
  func.func @_fused_mlp_kernel(%arg0: i32, %arg1: memref<16x32xbf16, #tpu.memory_space<vmem>>, %arg2: memref<32x128xbf16, #tpu.memory_space<vmem>>, %arg3: memref<1x128xf32, #tpu.memory_space<vmem>>, %arg4: memref<128x128xbf16, #tpu.memory_space<vmem>>, %arg5: memref<1x128xf32, #tpu.memory_space<vmem>>, %arg6: memref<128x128xbf16, #tpu.memory_space<vmem>>, %arg7: memref<1x128xf32, #tpu.memory_space<vmem>>, %arg8: memref<16x128xf32, #tpu.memory_space<vmem>>) attributes {dimension_semantics = [#tpu.dimension_semantics<parallel>], iteration_bounds = array<i64: 1>, scalar_prefetch = 0 : i64, scratch_operands = 0 : i64, tpu.core_type = #tpu.core_type<tc>, window_params = [{transform_indices = @transform_0, window_bounds = array<i64: 16, 32>}, {pipeline_mode = #tpu.pipeline_mode<synchronous>, transform_indices = @transform_1, window_bounds = array<i64: 32, 128>}, {pipeline_mode = #tpu.pipeline_mode<synchronous>, transform_indices = @transform_2, window_bounds = array<i64: 1, 128>}, {pipeline_mode = #tpu.pipeline_mode<synchronous>, transform_indices = @transform_3, window_bounds = array<i64: 128, 128>}, {pipeline_mode = #tpu.pipeline_mode<synchronous>, transform_indices = @transform_4, window_bounds = array<i64: 1, 128>}, {pipeline_mode = #tpu.pipeline_mode<synchronous>, transform_indices = @transform_5, window_bounds = array<i64: 128, 128>}, {pipeline_mode = #tpu.pipeline_mode<synchronous>, transform_indices = @transform_6, window_bounds = array<i64: 1, 128>}, {transform_indices = @transform_7, window_bounds = array<i64: 16, 128>}]} {
    %c0 = arith.constant 0 : index
    %c0_0 = arith.constant 0 : index
    %0 = vector.load %arg1[%c0, %c0_0] : memref<16x32xbf16, #tpu.memory_space<vmem>>, vector<16x32xbf16>
    %c0_1 = arith.constant 0 : index
    %c0_2 = arith.constant 0 : index
    %1 = vector.load %arg2[%c0_1, %c0_2] : memref<32x128xbf16, #tpu.memory_space<vmem>>, vector<32x128xbf16>
    %c0_3 = arith.constant 0 : index
    %c0_4 = arith.constant 0 : index
    %2 = vector.load %arg3[%c0_3, %c0_4] : memref<1x128xf32, #tpu.memory_space<vmem>>, vector<1x128xf32>
    %cst = arith.constant dense<0.000000e+00> : vector<16x128xf32>
    %3 = tpu.matmul %0, %1, %cst {dimension_numbers = #tpu.dot_dimension_numbers<[1], [0], [0], [1], [0, 0, 1, 1], [], []>} : vector<16x32xbf16>, vector<32x128xbf16>, vector<16x128xf32> -> vector<16x128xf32>
    %4 = vector.broadcast %2 : vector<1x128xf32> to vector<16x128xf32>
    %5 = arith.addf %3, %4 : vector<16x128xf32>
    %cst_5 = arith.constant 0.000000e+00 : f32
    %6 = vector.broadcast %cst_5 : f32 to vector<16x128xf32>
    %7 = arith.maximumf %5, %6 : vector<16x128xf32>
    %c0_6 = arith.constant 0 : index
    %c0_7 = arith.constant 0 : index
    %8 = vector.load %arg4[%c0_6, %c0_7] : memref<128x128xbf16, #tpu.memory_space<vmem>>, vector<128x128xbf16>
    %c0_8 = arith.constant 0 : index
    %c0_9 = arith.constant 0 : index
    %9 = vector.load %arg5[%c0_8, %c0_9] : memref<1x128xf32, #tpu.memory_space<vmem>>, vector<1x128xf32>
    %10 = arith.truncf %7 : vector<16x128xf32> to vector<16x128xbf16>
    %cst_10 = arith.constant dense<0.000000e+00> : vector<16x128xf32>
    %11 = tpu.matmul %10, %8, %cst_10 {dimension_numbers = #tpu.dot_dimension_numbers<[1], [0], [0], [1], [0, 0, 1, 1], [], []>} : vector<16x128xbf16>, vector<128x128xbf16>, vector<16x128xf32> -> vector<16x128xf32>
    %12 = vector.broadcast %9 : vector<1x128xf32> to vector<16x128xf32>
    %13 = arith.addf %11, %12 : vector<16x128xf32>
    %cst_11 = arith.constant 0.000000e+00 : f32
    %14 = vector.broadcast %cst_11 : f32 to vector<16x128xf32>
    %15 = arith.maximumf %13, %14 : vector<16x128xf32>
    %c0_12 = arith.constant 0 : index
    %c0_13 = arith.constant 0 : index
    %16 = vector.load %arg6[%c0_12, %c0_13] : memref<128x128xbf16, #tpu.memory_space<vmem>>, vector<128x128xbf16>
    %c0_14 = arith.constant 0 : index
    %c0_15 = arith.constant 0 : index
    %17 = vector.load %arg7[%c0_14, %c0_15] : memref<1x128xf32, #tpu.memory_space<vmem>>, vector<1x128xf32>
    %18 = arith.truncf %15 : vector<16x128xf32> to vector<16x128xbf16>
    %cst_16 = arith.constant dense<0.000000e+00> : vector<16x128xf32>
    %19 = tpu.matmul %18, %16, %cst_16 {dimension_numbers = #tpu.dot_dimension_numbers<[1], [0], [0], [1], [0, 0, 1, 1], [], []>} : vector<16x128xbf16>, vector<128x128xbf16>, vector<16x128xf32> -> vector<16x128xf32>
    %20 = vector.broadcast %17 : vector<1x128xf32> to vector<16x128xf32>
    %21 = arith.addf %19, %20 : vector<16x128xf32>
    %c0_17 = arith.constant 0 : index
    %c0_18 = arith.constant 0 : index
    %22 = vector.load %arg8[%c0_17, %c0_18] : memref<16x128xf32, #tpu.memory_space<vmem>>, vector<16x128xf32>
    tpu.vector_store %arg8[%c0_17, %c0_18], %21 {strides = array<i32>} : memref<16x128xf32, #tpu.memory_space<vmem>>, vector<16x128xf32>,
    return
  }
  func.func @transform_0(%arg0: i32) -> (i32, i32) {
    %c0_i32 = arith.constant 0 : i32
    %c0_i32_0 = arith.constant 0 : i32
    return %arg0, %c0_i32 : i32, i32
  }
  func.func @transform_1(%arg0: i32) -> (i32, i32) {
    %c0_i32 = arith.constant 0 : i32
    %c0_i32_0 = arith.constant 0 : i32
    %c0_i32_1 = arith.constant 0 : i32
    return %c0_i32, %c0_i32_0 : i32, i32
  }
  func.func @transform_2(%arg0: i32) -> (i32, i32) {
    %c0_i32 = arith.constant 0 : i32
    %c0_i32_0 = arith.constant 0 : i32
    %c0_i32_1 = arith.constant 0 : i32
    return %c0_i32, %c0_i32_0 : i32, i32
  }
  func.func @transform_3(%arg0: i32) -> (i32, i32) {
    %c0_i32 = arith.constant 0 : i32
    %c0_i32_0 = arith.constant 0 : i32
    %c0_i32_1 = arith.constant 0 : i32
    return %c0_i32, %c0_i32_0 : i32, i32
  }
  func.func @transform_4(%arg0: i32) -> (i32, i32) {
    %c0_i32 = arith.constant 0 : i32
    %c0_i32_0 = arith.constant 0 : i32
    %c0_i32_1 = arith.constant 0 : i32
    return %c0_i32, %c0_i32_0 : i32, i32
  }
  func.func @transform_5(%arg0: i32) -> (i32, i32) {
    %c0_i32 = arith.constant 0 : i32
    %c0_i32_0 = arith.constant 0 : i32
    %c0_i32_1 = arith.constant 0 : i32
    return %c0_i32, %c0_i32_0 : i32, i32
  }
  func.func @transform_6(%arg0: i32) -> (i32, i32) {
    %c0_i32 = arith.constant 0 : i32
    %c0_i32_0 = arith.constant 0 : i32
    %c0_i32_1 = arith.constant 0 : i32
    return %c0_i32, %c0_i32_0 : i32, i32
  }
  func.func @transform_7(%arg0: i32) -> (i32, i32) {
    %c0_i32 = arith.constant 0 : i32
    %c0_i32_0 = arith.constant 0 : i32
    return %arg0, %c0_i32 : i32, i32
  }
}

</mosaic_0001>

<llo_original>
// kernel: forward.1
$region0: #{forward.1}
  #allocation0 [shape = 'u32[]', space=smem, size = 0x4, offset = 0x4, fixed_abs, tag = 'smem constant byte address 0x4 - core index']
  #allocation1 [shape = 'u32[144,128]{1,0:T(1,128)}', space=vmem, size = 0x12000, scoped, tag = 'internal scratch']
  %s0 = inlined_call_operand.vmem [shape: bf16[16,32], index: 0, kind: input, shape index: {}]
  %s1 = inlined_call_operand.vmem [shape: bf16[32,128], index: 1, kind: input, shape index: {}]
  %s2 = inlined_call_operand.vmem [shape: f32[1,128], index: 2, kind: input, shape index: {}]
  %s3 = inlined_call_operand.hbm [shape: bf16[128,128], index: 3, kind: input, shape index: {}]
  %s4 = inlined_call_operand.vmem [shape: f32[1,128], index: 4, kind: input, shape index: {}]
  %s5 = inlined_call_operand.hbm [shape: bf16[128,128], index: 5, kind: input, shape index: {}]
  %s6 = inlined_call_operand.vmem [shape: f32[1,128], index: 6, kind: input, shape index: {}]
  %s7 = inlined_call_operand.vmem [shape: f32[16,128], index: 7, kind: output, shape index: {}]
  %s8 = sld [smem:[#allocation0]]
  $region46: #{forward.1} parent=0
    _
  %s10 = ssub.s32 1, %s8
  %s11 = scalar_select 0, %s10, %s8
  $region1: #{forward.1} parent=0
    #allocation2 [shape = 'u8[32768]{0}', space=vmem, size = 0x8000, scoped, tag = 'input window, operand 3, single buffered']
    #allocation3 [shape = 's32[1]{0}', space=sflag, size = 0x4, scoped, tag = 'scoped memory for forward.1']
    #allocation4 [shape = 'u8[32768]{0}', space=vmem, size = 0x8000, scoped, tag = 'input window, operand 5, single buffered']
    #allocation5 [shape = 's32[1]{0}', space=sflag, size = 0x4, scoped, tag = 'scoped memory for forward.1']
    %12 = vsyncpa [#allocation3], 0
    %13 = vsyncpa [#allocation5], 0
    // Predicated region
    $region2: #{forward.1} parent=1 // pred_check
      _
    $region3: #{forward.1} parent=1 // pred_check_branch
      %15 = sbr.rel (0) target = $region5
    $region4: #{forward.1} parent=1 // pred_region
      _
    $region5: #{forward.1} parent=1 // pred_fallthru
      _
    // Predicated region
    $region6: #{forward.1} parent=1 // pred_check
      _
    $region7: #{forward.1} parent=1 // pred_check_branch
      %17 = sbr.rel (0) target = $region9
    $region8: #{forward.1} parent=1 // pred_region
      _
    $region9: #{forward.1} parent=1 // pred_fallthru
      _
    // Predicated region
    $region10: #{forward.1} parent=1 // pred_check
      _
    $region11: #{forward.1} parent=1 // pred_check_branch
      %19 = sbr.rel (0) target = $region13
    $region12: #{forward.1} parent=1 // pred_region
      _
    $region13: #{forward.1} parent=1 // pred_fallthru
      _
    // Predicated region
    $region14: #{forward.1} parent=1 // pred_check
      _
    $region15: #{forward.1} parent=1 // pred_check_branch
      %21 = sbr.rel (0) target = $region17
    $region16: #{forward.1} parent=1 // pred_region
      %s23 = ssub.s32 1024, 1024
      %24 = vsyncadd [#allocation3], %s23
      %s25 = sshll.u32 [#allocation2], 4
      %s26 = int_to_ptr.vmem [resolvable:$true] %s25
      %31 = dma.hbm_to_vmem [thread:$0]  %s3, 1024, %s26, [#allocation3], 64, 64, 4
    $region17: #{forward.1} parent=1 // pred_fallthru
      _
    // Predicated region
    $region18: #{forward.1} parent=1 // pred_check
      _
    $region19: #{forward.1} parent=1 // pred_check_branch
      %33 = sbr.rel (0) target = $region21
    $region20: #{forward.1} parent=1 // pred_region
      _
    $region21: #{forward.1} parent=1 // pred_fallthru
      _
    // Predicated region
    $region22: #{forward.1} parent=1 // pred_check
      _
    $region23: #{forward.1} parent=1 // pred_check_branch
      %35 = sbr.rel (0) target = $region25
    $region24: #{forward.1} parent=1 // pred_region
      %s37 = ssub.s32 1024, 1024
      %38 = vsyncadd [#allocation5], %s37
      %s39 = sshll.u32 [#allocation4], 4
      %s40 = int_to_ptr.vmem [resolvable:$true] %s39
      %45 = dma.hbm_to_vmem [thread:$0]  %s5, 1024, %s40, [#allocation5], 64, 64, 4
    $region25: #{forward.1} parent=1 // pred_fallthru
      _
    // Predicated region
    $region26: #{forward.1} parent=1 // pred_check
      _
    $region27: #{forward.1} parent=1 // pred_check_branch
      %47 = sbr.rel (0) target = $region29
    $region28: #{forward.1} parent=1 // pred_region
      _
    $region29: #{forward.1} parent=1 // pred_fallthru
      _
    // Predicated region
    $region30: #{forward.1} parent=1 // pred_check
      _
    $region31: #{forward.1} parent=1 // pred_check_branch
      %49 = sbr.rel (0) target = $region33
    $region32: #{forward.1} parent=1 // pred_region
      %50 = dma.done [#allocation3], 1024
    $region33: #{forward.1} parent=1 // pred_fallthru
      _
    // Predicated region
    $region34: #{forward.1} parent=1 // pred_check
      _
    $region35: #{forward.1} parent=1 // pred_check_branch
      %52 = sbr.rel (0) target = $region37
    $region36: #{forward.1} parent=1 // pred_region
      %53 = dma.done [#allocation5], 1024
    $region37: #{forward.1} parent=1 // pred_fallthru
      _
    %v55 = vld [vmem:[%s0] sm:$0xf]
    %v56 = vld [vmem:[%s0 + $0x4] sm:$0xf]
    %v57 = vld [vmem:[%s1] sm:$0xf]
    %v58 = vld [vmem:[%s1 + $0x4] sm:$0xf]
    %v59 = vld [vmem:[%s1 + $0x8] sm:$0xf]
    %v60 = vld [vmem:[%s1 + $0xc] sm:$0xf]
    %v61 = vld [vmem:[%s2] sm:$0x1]
    %v63 = vlaneseq
    %v64 = vshrl.u32 %v63, 7
    %v65 = vsub.s32 0, %v64
    %v66 = vrot.slane %v61, %v65
    %v70 = vunpack.c.l.b16 %v55
    %v71 = vunpack.c.l.b16 %v56
    %v72 = vpack.c.b16 %v71, %v70
    %v77 = vunpack.c.l.b16 %v57
    %v78 = vunpack.c.l.b16 %v58
    %v79 = vunpack.c.l.b16 %v59
    %v80 = vunpack.c.l.b16 %v60
    %v81 = vpack.c.b16 %v78, %v77
    %v82 = vpack.c.b16 %v80, %v79
    %vm85 = vcmask 261120
    %v87 = vsel %vm85, %v72, 0
    %89 = vmatprep.subr.bf16.mxu0 0
    %90 = vmatpush1.bf16.msra.mxu0 %v81
    %91 = vmatprep.subr.bf16.mxu0 0
    %92 = vmatpush1.bf16.msra.mxu0 %v82
    %93 = vmatprep.subr.bf16.mxu0 0
    %94 = vmatpush1.bf16.msra.mxu0 0
    %95 = vmatprep.subr.bf16.mxu0 0
    %96 = vmatpush1.bf16.msra.mxu0 0
    %97 = vmatprep.subr.bf16.mxu0 0
    %98 = vmatpush1.bf16.msra.mxu0 0
    %99 = vmatprep.subr.bf16.mxu0 0
    %100 = vmatpush1.bf16.msra.mxu0 0
    %101 = vmatprep.subr.bf16.mxu0 0
    %102 = vmatpush1.bf16.msra.mxu0 0
    %103 = vmatprep.subr.bf16.mxu0 0
    %104 = vmatpush1.bf16.msra.mxu0 0
    %105 = vmatprep.subr.bf16.mxu0 0
    %106 = vmatpush1.bf16.msra.mxu0 0
    %107 = vmatprep.subr.bf16.mxu0 0
    %108 = vmatpush1.bf16.msra.mxu0 0
    %109 = vmatprep.subr.bf16.mxu0 0
    %110 = vmatpush1.bf16.msra.mxu0 0
    %111 = vmatprep.subr.bf16.mxu0 0
    %112 = vmatpush1.bf16.msra.mxu0 0
    %113 = vmatprep.subr.bf16.mxu0 0
    %114 = vmatpush1.bf16.msra.mxu0 0
    %115 = vmatprep.subr.bf16.mxu0 0
    %116 = vmatpush1.bf16.msra.mxu0 0
    %117 = vmatprep.subr.bf16.mxu0 0
    %118 = vmatpush1.bf16.msra.mxu0 0
    %119 = vmatprep.subr.bf16.mxu0 0
    %120 = vmatpush1.bf16.msra.mxu0 0
    %121 = vmatprep.mubr.bf16.mxu0 0
    %122 = vmatmul.mubr.bf16.gmra.mrb[0].mxu0 %v87
    %v123 = vpop.f32.mrb[0].mxu0
    %v124 = vadd.f32 %v66, %v123
    %v125 = vpop.f32.mrb[0].mxu0
    %v126 = vpop.f32.mrb[0].mxu0
    %v127 = vadd.f32 %v66, %v126
    %v128 = vpop.f32.mrb[0].mxu0
    %129 = vdwg.mxu0
    %v130 = vmax.f32 %v124, 0.0
    %v131 = vmax.f32 %v127, 0.0
    %v132 = vld [vmem:[#allocation2] sm:$0xf]
    %v133 = vld [vmem:[#allocation2 + $0x4] sm:$0xf]
    %v134 = vld [vmem:[#allocation2 + $0x8] sm:$0xf]
    %v135 = vld [vmem:[#allocation2 + $0xc] sm:$0xf]
    %v136 = vld [vmem:[#allocation2 + $0x10] sm:$0xf]
    %v137 = vld [vmem:[#allocation2 + $0x14] sm:$0xf]
    %v138 = vld [vmem:[#allocation2 + $0x18] sm:$0xf]
    %v139 = vld [vmem:[#allocation2 + $0x1c] sm:$0xf]
    %v140 = vld [vmem:[#allocation2 + $0x20] sm:$0xf]
    %v141 = vld [vmem:[#allocation2 + $0x24] sm:$0xf]
    %v142 = vld [vmem:[#allocation2 + $0x28] sm:$0xf]
    %v143 = vld [vmem:[#allocation2 + $0x2c] sm:$0xf]
    %v144 = vld [vmem:[#allocation2 + $0x30] sm:$0xf]
    %v145 = vld [vmem:[#allocation2 + $0x34] sm:$0xf]
    %v146 = vld [vmem:[#allocation2 + $0x38] sm:$0xf]
    %v147 = vld [vmem:[#allocation2 + $0x3c] sm:$0xf]
    %v148 = vld [vmem:[%s4] sm:$0x1]
    %v149 = vpack.c.bf16 %v131, %v130
    %v151 = vlaneseq
    %v152 = vshrl.u32 %v151, 7
    %v153 = vsub.s32 0, %v152
    %v154 = vrot.slane %v148, %v153
    %v172 = vunpack.c.l.b16 %v132
    %v173 = vunpack.c.l.b16 %v133
    %v174 = vunpack.c.l.b16 %v134
    %v175 = vunpack.c.l.b16 %v135
    %v176 = vunpack.c.l.b16 %v136
    %v177 = vunpack.c.l.b16 %v137
    %v178 = vunpack.c.l.b16 %v138
    %v179 = vunpack.c.l.b16 %v139
    %v180 = vunpack.c.l.b16 %v140
    %v181 = vunpack.c.l.b16 %v141
    %v182 = vunpack.c.l.b16 %v142
    %v183 = vunpack.c.l.b16 %v143
    %v184 = vunpack.c.l.b16 %v144
    %v185 = vunpack.c.l.b16 %v145
    %v186 = vunpack.c.l.b16 %v146
    %v187 = vunpack.c.l.b16 %v147
    %v188 = vpack.c.b16 %v173, %v172
    %v189 = vpack.c.b16 %v175, %v174
    %v190 = vpack.c.b16 %v177, %v176
    %v191 = vpack.c.b16 %v179, %v178
    %v192 = vpack.c.b16 %v181, %v180
    %v193 = vpack.c.b16 %v183, %v182
    %v194 = vpack.c.b16 %v185, %v184
    %v195 = vpack.c.b16 %v187, %v186
    %204 = vmatprep.subr.bf16.mxu0 0
    %205 = vmatpush1.bf16.msra.mxu0 %v188
    %206 = vmatprep.subr.bf16.mxu0 0
    %207 = vmatpush1.bf16.msra.mxu0 %v189
    %208 = vmatprep.subr.bf16.mxu0 0
    %209 = vmatpush1.bf16.msra.mxu0 %v190
    %210 = vmatprep.subr.bf16.mxu0 0
    %211 = vmatpush1.bf16.msra.mxu0 %v191
    %212 = vmatprep.subr.bf16.mxu0 0
    %213 = vmatpush1.bf16.msra.mxu0 %v192
    %214 = vmatprep.subr.bf16.mxu0 0
    %215 = vmatpush1.bf16.msra.mxu0 %v193
    %216 = vmatprep.subr.bf16.mxu0 0
    %217 = vmatpush1.bf16.msra.mxu0 %v194
    %218 = vmatprep.subr.bf16.mxu0 0
    %219 = vmatpush1.bf16.msra.mxu0 %v195
    %220 = vmatprep.subr.bf16.mxu0 0
    %221 = vmatpush1.bf16.msra.mxu0 0
    %222 = vmatprep.subr.bf16.mxu0 0
    %223 = vmatpush1.bf16.msra.mxu0 0
    %224 = vmatprep.subr.bf16.mxu0 0
    %225 = vmatpush1.bf16.msra.mxu0 0
    %226 = vmatprep.subr.bf16.mxu0 0
    %227 = vmatpush1.bf16.msra.mxu0 0
    %228 = vmatprep.subr.bf16.mxu0 0
    %229 = vmatpush1.bf16.msra.mxu0 0
    %230 = vmatprep.subr.bf16.mxu0 0
    %231 = vmatpush1.bf16.msra.mxu0 0
    %232 = vmatprep.subr.bf16.mxu0 0
    %233 = vmatpush1.bf16.msra.mxu0 0
    %234 = vmatprep.subr.bf16.mxu0 0
    %235 = vmatpush1.bf16.msra.mxu0 0
    %236 = vmatprep.mubr.bf16.mxu0 0
    %237 = vmatmul.mubr.bf16.gmra.mrb[0].mxu0 %v149
    %v238 = vpop.f32.mrb[0].mxu0
    %v239 = vadd.f32 %v154, %v238
    %v240 = vpop.f32.mrb[0].mxu0
    %v241 = vpop.f32.mrb[0].mxu0
    %v242 = vadd.f32 %v154, %v241
    %v243 = vpop.f32.mrb[0].mxu0
    %244 = vdwg.mxu0
    %v245 = vmax.f32 %v239, 0.0
    %v246 = vmax.f32 %v242, 0.0
    %v247 = vld [vmem:[#allocation4] sm:$0xf]
    %v248 = vld [vmem:[#allocation4 + $0x4] sm:$0xf]
    %v249 = vld [vmem:[#allocation4 + $0x8] sm:$0xf]
    %v250 = vld [vmem:[#allocation4 + $0xc] sm:$0xf]
    %v251 = vld [vmem:[#allocation4 + $0x10] sm:$0xf]
    %v252 = vld [vmem:[#allocation4 + $0x14] sm:$0xf]
    %v253 = vld [vmem:[#allocation4 + $0x18] sm:$0xf]
    %v254 = vld [vmem:[#allocation4 + $0x1c] sm:$0xf]
    %v255 = vld [vmem:[#allocation4 + $0x20] sm:$0xf]
    %v256 = vld [vmem:[#allocation4 + $0x24] sm:$0xf]
    %v257 = vld [vmem:[#allocation4 + $0x28] sm:$0xf]
    %v258 = vld [vmem:[#allocation4 + $0x2c] sm:$0xf]
    %v259 = vld [vmem:[#allocation4 + $0x30] sm:$0xf]
    %v260 = vld [vmem:[#allocation4 + $0x34] sm:$0xf]
    %v261 = vld [vmem:[#allocation4 + $0x38] sm:$0xf]
    %v262 = vld [vmem:[#allocation4 + $0x3c] sm:$0xf]
    %v263 = vld [vmem:[%s6] sm:$0x1]
    %v264 = vpack.c.bf16 %v246, %v245
    %v266 = vlaneseq
    %v267 = vshrl.u32 %v266, 7
    %v268 = vsub.s32 0, %v267
    %v269 = vrot.slane %v263, %v268
    %v287 = vunpack.c.l.b16 %v247
    %v288 = vunpack.c.l.b16 %v248
    %v289 = vunpack.c.l.b16 %v249
    %v290 = vunpack.c.l.b16 %v250
    %v291 = vunpack.c.l.b16 %v251
    %v292 = vunpack.c.l.b16 %v252
    %v293 = vunpack.c.l.b16 %v253
    %v294 = vunpack.c.l.b16 %v254
    %v295 = vunpack.c.l.b16 %v255
    %v296 = vunpack.c.l.b16 %v256
    %v297 = vunpack.c.l.b16 %v257
    %v298 = vunpack.c.l.b16 %v258
    %v299 = vunpack.c.l.b16 %v259
    %v300 = vunpack.c.l.b16 %v260
    %v301 = vunpack.c.l.b16 %v261
    %v302 = vunpack.c.l.b16 %v262
    %v303 = vpack.c.b16 %v288, %v287
    %v304 = vpack.c.b16 %v290, %v289
    %v305 = vpack.c.b16 %v292, %v291
    %v306 = vpack.c.b16 %v294, %v293
    %v307 = vpack.c.b16 %v296, %v295
    %v308 = vpack.c.b16 %v298, %v297
    %v309 = vpack.c.b16 %v300, %v299
    %v310 = vpack.c.b16 %v302, %v301
    %319 = vmatprep.subr.bf16.mxu0 0
    %320 = vmatpush1.bf16.msra.mxu0 %v303
    %321 = vmatprep.subr.bf16.mxu0 0
    %322 = vmatpush1.bf16.msra.mxu0 %v304
    %323 = vmatprep.subr.bf16.mxu0 0
    %324 = vmatpush1.bf16.msra.mxu0 %v305
    %325 = vmatprep.subr.bf16.mxu0 0
    %326 = vmatpush1.bf16.msra.mxu0 %v306
    %327 = vmatprep.subr.bf16.mxu0 0
    %328 = vmatpush1.bf16.msra.mxu0 %v307
    %329 = vmatprep.subr.bf16.mxu0 0
    %330 = vmatpush1.bf16.msra.mxu0 %v308
    %331 = vmatprep.subr.bf16.mxu0 0
    %332 = vmatpush1.bf16.msra.mxu0 %v309
    %333 = vmatprep.subr.bf16.mxu0 0
    %334 = vmatpush1.bf16.msra.mxu0 %v310
    %335 = vmatprep.subr.bf16.mxu0 0
    %336 = vmatpush1.bf16.msra.mxu0 0
    %337 = vmatprep.subr.bf16.mxu0 0
    %338 = vmatpush1.bf16.msra.mxu0 0
    %339 = vmatprep.subr.bf16.mxu0 0
    %340 = vmatpush1.bf16.msra.mxu0 0
    %341 = vmatprep.subr.bf16.mxu0 0
    %342 = vmatpush1.bf16.msra.mxu0 0
    %343 = vmatprep.subr.bf16.mxu0 0
    %344 = vmatpush1.bf16.msra.mxu0 0
    %345 = vmatprep.subr.bf16.mxu0 0
    %346 = vmatpush1.bf16.msra.mxu0 0
    %347 = vmatprep.subr.bf16.mxu0 0
    %348 = vmatpush1.bf16.msra.mxu0 0
    %349 = vmatprep.subr.bf16.mxu0 0
    %350 = vmatpush1.bf16.msra.mxu0 0
    %351 = vmatprep.mubr.bf16.mxu0 0
    %352 = vmatmul.mubr.bf16.gmra.mrb[0].mxu0 %v264
    %v353 = vpop.f32.mrb[0].mxu0
    %v354 = vadd.f32 %v269, %v353
    %v355 = vpop.f32.mrb[0].mxu0
    %v356 = vpop.f32.mrb[0].mxu0
    %v357 = vadd.f32 %v269, %v356
    %v358 = vpop.f32.mrb[0].mxu0
    %359 = vdwg.mxu0
    %360 = vst [vmem:[%s7] sm:$0xff] %v354
    %361 = vst [vmem:[%s7 + $0x8] sm:$0xff] %v357
    // Predicated region
    $region38: #{forward.1} parent=1 // pred_check
      _
    $region39: #{forward.1} parent=1 // pred_check_branch
      %363 = sbr.rel (0) target = $region41
    $region40: #{forward.1} parent=1 // pred_region
      _
    $region41: #{forward.1} parent=1 // pred_fallthru
      _
    // Predicated region
    $region42: #{forward.1} parent=1 // pred_check
      _
    $region43: #{forward.1} parent=1 // pred_check_branch
      %365 = sbr.rel (0) target = $region45
    $region44: #{forward.1} parent=1 // pred_region
      _
    $region45: #{forward.1} parent=1 // pred_fallthru
      _
    %366 = vsyncpa [#allocation3], 1
    %367 = vsyncpa [#allocation5], 1

</llo_original>
